<compile_context>
chip_gen: v7x
topology: tpu7x:2x2x1
jax: 0.10.0
libtpu: 0.0.40
codegen_flags: <defaults>
</compile_context>

<pallas_src>
import jax
import jax.numpy as jnp
from jax import lax
from jax.experimental import pallas as pl
from jax.experimental.pallas import tpu as pltpu


def _gram_partial_kernel(f_ref, out_ref):
    # f_ref:   (1, c, TK)   VMEM tile for (split s, batch i, hw-chunk k)
    # out_ref: (1, 1, c, c) f32 partial Gram, resident across k (accumulator)
    k = pl.program_id(2)

    @pl.when(k == 0)
    def _():
        out_ref[...] = jnp.zeros_like(out_ref)

    # In-kernel bf16 cast -> native bf16 MXU path; f32 accumulation.
    fb = f_ref[0].astype(jnp.bfloat16)  # (c, TK)
    # A @ A^T by contracting both operands on their last (lane) dim: no
    # materialized transpose of the (c, TK) tile.
    g = lax.dot_general(
        fb, fb,
        dimension_numbers=(((1,), (1,)), ((), ())),
        preferred_element_type=jnp.float32,
    )
    out_ref[...] = out_ref[...] + g[None, None]


def _round_up(x, m):
    return ((x + m - 1) // m) * m


def _largest_divisor_leq(n, cap):
    """Largest divisor of n that is <= cap (>= 1)."""
    cap = max(1, min(cap, n))
    best, d = 1, 1
    while d * d <= n:
        if n % d == 0:
            if d <= cap and d > best:
                best = d
            q = n // d
            if q <= cap and q > best:
                best = q
        d += 1
    return best


def _vmem_capacity_bytes():
    try:
        cap = getattr(pltpu.get_tpu_info(), "vmem_capacity_bytes", None)
        if cap:
            return int(cap)
    except Exception:
        pass
    return 64 << 20  # conservative default = smallest per-TC VMEM (v7x)


def gram_mse_loss(x, gram_target):
    """x: (b, c, h, w) NCHW features; gram_target: (b, c, c) -> scalar MSE loss."""
    b, c, h, w = x.shape
    hw = h * w

    f = x.reshape(b, c, hw)  # keep caller dtype (bf16 input halves HBM bytes)
    itemsize = jnp.dtype(f.dtype).itemsize

    # Lane requirement only: pad hw to a multiple of 128. Zeros are benign for
    # the Gram sum; the true-hw division happens in the epilogue. Most conv
    # feature maps are already 128-aligned -> no pad, no extra HBM copy.
    hw_p = _round_up(hw, 128)
    if hw_p != hw:
        f = jnp.pad(f, ((0, 0), (0, 0), (0, hw_p - hw)))
    n128 = hw_p // 128

    # Split the hw reduction across two cores when batch-parallelism alone
    # can't feed a 2-TC chip (v7x, b == 1). Harmless on 1-TC chips.
    split = 2 if (b == 1 and n128 % 2 == 0 and n128 >= 2) else 1
    n_per = n128 // split

    # Generation-aware TK: largest 128-multiple divisor of the per-core range
    # that fits the per-buffer budget (min(VMEM/8, 8 MiB) -> >=2-4 MiB tiles
    # where possible, which reaches the HBM roofline, without overflowing
    # v7x's 64 MiB VMEM when double-buffered).
    vmem_cap = _vmem_capacity_bytes()
    per_buf_budget = min(vmem_cap // 8, 8 << 20)
    cap128 = max(1, per_buf_budget // (c * itemsize * 128))
    d = _largest_divisor_leq(n_per, cap128)
    tk = 128 * d
    nk = n_per // d

    needed = 2 * c * tk * itemsize + 2 * c * c * 4  # double-buffered f + out
    vmem_limit = int(min(vmem_cap, max(32 << 20, needed + (8 << 20))))

    cost = pl.CostEstimate(
        flops=2 * b * c * c * hw_p,
        transcendentals=0,
        bytes_accessed=b * c * hw_p * itemsize + split * b * c * c * 4,
    )

    partial_grams = pl.pallas_call(
        _gram_partial_kernel,
        out_shape=jax.ShapeDtypeStruct((split, b, c, c), jnp.float32),
        grid_spec=pltpu.PrefetchScalarGridSpec(
            num_scalar_prefetch=0,
            grid=(split, b, nk),
            in_specs=[
                # New hw chunk every k step; core s owns blocks [s*nk, (s+1)*nk).
                pl.BlockSpec((1, c, tk), lambda s, i, k: (i, 0, s * nk + k)),
            ],
            # Resident across k (accumulator); one (c,c) slab per (split, batch).
            out_specs=pl.BlockSpec((1, 1, c, c), lambda s, i, k: (s, i, 0, 0)),
        ),
        compiler_params=pltpu.CompilerParams(
            dimension_semantics=("parallel", "parallel", "arbitrary"),
            vmem_limit_bytes=vmem_limit,
        ),
        cost_estimate=cost,
    )(f)

    # Tiny O(b*c^2) epilogue in XLA: combine core partials, scale by true hw,
    # nn.MSELoss default 'mean' over all b*c*c Gram entries.
    gram = jnp.sum(partial_grams, axis=0) * jnp.float32(1.0 / hw)
    diff = gram - gram_target.astype(jnp.float32)
    return jnp.mean(diff * diff)


def _ref_loss(x, gram_target, *, bf16_operands):
    b, c, h, w = x.shape
    fx = x.reshape(b, c, h * w).astype(jnp.float32)
    if bf16_operands:
        fx = fx.astype(jnp.bfloat16).astype(jnp.float32)
    gram = jnp.einsum("bcn,bdn->bcd", fx, fx,
                      precision=lax.Precision.HIGHEST) / (h * w)
    return jnp.mean((gram - gram_target.astype(jnp.float32)) ** 2)


if __name__ == "__main__":
    key = jax.random.PRNGKey(0)
    kx, kt = jax.random.split(key)

    b, c, h, w = 2, 4, 16, 16
    x = jax.random.normal(kx, (b, c, h, w), dtype=jnp.float32)
    # Deterministic synthetic Gram target of the correct shape (b, c, c).
    t_feat = jax.random.normal(kt, (b, c, h, w), dtype=jnp.float32)
    tf = t_feat.reshape(b, c, h * w)
    gram_target = jnp.einsum("bcn,bdn->bcd", tf, tf,
                             precision=lax.Precision.HIGHEST) / (h * w)

    loss = gram_mse_loss(x, gram_target)
    jax.block_until_ready(loss)

    # Tight check vs. a reference that mirrors the kernel's bf16-operand /
    # f32-accumulate MXU path.
    ref_bf16 = _ref_loss(x, gram_target, bf16_operands=True)
    assert jnp.allclose(loss, ref_bf16, rtol=1e-4, atol=1e-5), (loss, ref_bf16)
    # Loose sanity check vs. exact f32 math (bf16 operand rounding only).
    ref_f32 = _ref_loss(x, gram_target, bf16_operands=False)
    assert jnp.allclose(loss, ref_f32, rtol=5e-2, atol=1e-3), (loss, ref_f32)

    # Also exercise the b == 1 path (hw reduction split across 2 TensorCores).
    x1, gt1 = x[:1], gram_target[:1]
    loss1 = gram_mse_loss(x1, gt1)
    jax.block_until_ready(loss1)
    ref1 = _ref_loss(x1, gt1, bf16_operands=True)
    assert jnp.allclose(loss1, ref1, rtol=1e-4, atol=1e-5), (loss1, ref1)

    print("KERNEL_OK")
</pallas_src>

<mosaic_0001>
module attributes {stable_mosaic.version = 11 : i64} {
  func.func @_gram_partial_kernel(%arg0: i32, %arg1: i32, %arg2: i32, %arg3: memref<1x4x256xf32, #tpu.memory_space<vmem>>, %arg4: memref<1x1x4x4xf32, #tpu.memory_space<vmem>>) attributes {dimension_semantics = [#tpu.dimension_semantics<parallel>, #tpu.dimension_semantics<parallel>, #tpu.dimension_semantics<arbitrary>], iteration_bounds = array<i64: 1, 2, 1>, scalar_prefetch = 0 : i64, scratch_operands = 0 : i64, tpu.core_type = #tpu.core_type<tc>, window_params = [{transform_indices = @transform_0, window_bounds = array<i64: 1, 4, 256>}, {transform_indices = @transform_1, window_bounds = array<i64: 1, 1, 4, 4>}]} {
    %c0_i32 = arith.constant 0 : i32
    %0 = arith.cmpi eq, %arg2, %c0_i32 : i32
    %1 = arith.extui %0 : i1 to i32
    %c0_i32_0 = arith.constant 0 : i32
    %2 = arith.cmpi ne, %1, %c0_i32_0 : i32
    scf.if %2 {
      %cst_11 = arith.constant 0.000000e+00 : f32
      %11 = vector.broadcast %cst_11 : f32 to vector<1x1x4x4xf32>
      %c0_12 = arith.constant 0 : index
      %c0_13 = arith.constant 0 : index
      %c0_14 = arith.constant 0 : index
      %c0_15 = arith.constant 0 : index
      %12 = vector.load %arg4[%c0_12, %c0_13, %c0_14, %c0_15] : memref<1x1x4x4xf32, #tpu.memory_space<vmem>>, vector<1x1x4x4xf32>
      tpu.vector_store %arg4[%c0_12, %c0_13, %c0_14, %c0_15], %11 {strides = array<i32>} : memref<1x1x4x4xf32, #tpu.memory_space<vmem>>, vector<1x1x4x4xf32>,
    } else {
    }
    %c0 = arith.constant 0 : index
    %c0_1 = arith.constant 0 : index
    %c0_2 = arith.constant 0 : index
    %3 = vector.load %arg3[%c0, %c0_1, %c0_2] : memref<1x4x256xf32, #tpu.memory_space<vmem>>, vector<1x4x256xf32>
    %4 = vector.shape_cast %3 : vector<1x4x256xf32> to vector<4x256xf32>
    %5 = arith.truncf %4 : vector<4x256xf32> to vector<4x256xbf16>
    %cst = arith.constant dense<0.000000e+00> : vector<4x4xf32>
    %6 = tpu.matmul %5, %5, %cst {dimension_numbers = #tpu.dot_dimension_numbers<[1], [1], [0], [0], [0, 0, 1, 0], [], []>} : vector<4x256xbf16>, vector<4x256xbf16>, vector<4x4xf32> -> vector<4x4xf32>
    %c0_3 = arith.constant 0 : index
    %c0_4 = arith.constant 0 : index
    %c0_5 = arith.constant 0 : index
    %c0_6 = arith.constant 0 : index
    %7 = vector.load %arg4[%c0_3, %c0_4, %c0_5, %c0_6] : memref<1x1x4x4xf32, #tpu.memory_space<vmem>>, vector<1x1x4x4xf32>
    %8 = vector.shape_cast %6 : vector<4x4xf32> to vector<1x1x4x4xf32>
    %9 = arith.addf %7, %8 : vector<1x1x4x4xf32>
    %c0_7 = arith.constant 0 : index
    %c0_8 = arith.constant 0 : index
    %c0_9 = arith.constant 0 : index
    %c0_10 = arith.constant 0 : index
    %10 = vector.load %arg4[%c0_7, %c0_8, %c0_9, %c0_10] : memref<1x1x4x4xf32, #tpu.memory_space<vmem>>, vector<1x1x4x4xf32>
    tpu.vector_store %arg4[%c0_7, %c0_8, %c0_9, %c0_10], %9 {strides = array<i32>} : memref<1x1x4x4xf32, #tpu.memory_space<vmem>>, vector<1x1x4x4xf32>,
    return
  }
  func.func @transform_0(%arg0: i32, %arg1: i32, %arg2: i32) -> (i32, i32, i32) {
    %c1_i32 = arith.constant 1 : i32
    %0 = arith.muli %arg0, %c1_i32 : i32
    %1 = arith.addi %0, %arg2 : i32
    %c0_i32 = arith.constant 0 : i32
    %c0_i32_0 = arith.constant 0 : i32
    return %arg1, %c0_i32, %1 : i32, i32, i32
  }
  func.func @transform_1(%arg0: i32, %arg1: i32, %arg2: i32) -> (i32, i32, i32, i32) {
    %c0_i32 = arith.constant 0 : i32
    %c0_i32_0 = arith.constant 0 : i32
    %c0_i32_1 = arith.constant 0 : i32
    return %arg0, %arg1, %c0_i32, %c0_i32_0 : i32, i32, i32, i32
  }
}

</mosaic_0001>

<llo_original>
// kernel: tpu_custom_call.1
$region0: #{tpu_custom_call.1}
  #allocation0 [shape = 'u32[]', space=smem, size = 0x4, offset = 0x4, fixed_abs, tag = 'smem constant byte address 0x4 - core index']
  #allocation1 [shape = 'u32[144,128]{1,0:T(1,128)}', space=vmem, size = 0x12000, scoped, tag = 'internal scratch']
  %s0 = inlined_call_operand.hbm [shape: f32[2,4,256], index: 0, kind: input, shape index: {}]
  %s1 = inlined_call_operand.hbm [shape: f32[1,2,4,4], index: 1, kind: output, shape index: {}]
  %s2 = sld [smem:[#allocation0]]
  $region45: #{tpu_custom_call.1} parent=0
    _
  %s4 = ssub.s32 1, %s2
  %s5 = scalar_select 0, %s4, %s2
  $region1: #{tpu_custom_call.1} parent=0
    #allocation2 [shape = 'u8[8192]{0}', space=vmem, size = 0x2000, scoped, tag = 'input window, operand 0']
    #allocation3 [shape = 's32[2]{0}', space=sflag, size = 0x8, scoped, tag = 'scoped memory for tpu_custom_call.1']
    #allocation4 [shape = 's32[2]{0}', space=sflag, size = 0x8, scoped, tag = 'scoped memory for tpu_custom_call.1']
    #allocation5 [shape = 'u8[4096]{0}', space=vmem, size = 0x1000, scoped, tag = 'output window, operand 0']
    %6 = vsyncpa [#allocation3], 0
    %s7 = scalar_lea.sflag [#allocation3], 1
    %8 = vsyncpa %s7, 0
    %9 = vsyncpa [#allocation4], 0
    %s10 = scalar_lea.sflag [#allocation4], 1
    %11 = vsyncpa %s10, 0
    loop: start=0, step=1, limit=4
    $region2: #{tpu_custom_call.1} parent=1 // loop_pre_header
      _
    $region3: #{tpu_custom_call.1} parent=1 // loop_header
      %s13 = sphi 0, %s17
      %p14 = scmp.ge.s32.totalorder %s13, 4
      %s20 = sphi 0, %s39
      %s21 = sphi 0, %s35
      %s22 = sphi 0, %s31
      %s23 = sphi 0, %s20
      %s24 = sphi 0, %s21
      %s25 = sphi 0, %s22
      %s26 = sphi 0, %s23
      %s27 = sphi 0, %s24
      %s28 = sphi 0, %s25
      %s46 = sphi 0, %s48
      %s49 = sphi 0, %s46
      %s50 = sphi 0, %s49
      %s66 = sphi 0, %s50
      %s74 = sphi 0, %s76
      %s77 = sphi 0, %s74
      %s78 = sphi 0, %s77
      %s94 = sphi 0, %s78
    $region4: #{tpu_custom_call.1} parent=1 // loop_header_branch
      %16 = sbr.rel (%p14) target = $region8
    $region5: #{tpu_custom_call.1} parent=1 // loop_body
      %s18 = ssub.s32 %s13, 1
      %s19 = ssub.s32 %s13, 2
      %s29 = sadd.s32 1, %s22
      %p30 = scmp.ge.s32.totalorder %s29, 1
      %s31 = scalar_select %p30, 0, %s29
      %s32 = sadd.s32 1, %s21
      %s33 = scalar_select %p30, %s32, %s21
      %p34 = scmp.ge.s32.totalorder %s33, 2
      %s35 = scalar_select %p34, 0, %s33
      %s36 = sadd.s32 1, %s20
      %s37 = scalar_select %p34, %s36, %s20
      %p38 = scmp.ge.s32.totalorder %s37, 1
      %s39 = scalar_select %p38, 0, %s37
      %s40 = sadd.s32 %s20, %s22
      %s41 = sadd.s32 %s39, %s31
      %s42 = ssub.s32 %s21, %s35
      %s43 = ssub.s32 %s40, %s41
      %s44 = sor.u32 %s42, %s43
      %p45 = scmp.eq.s32.totalorder %s44, 0
      %s47 = sadd.s32 %s46, 1
      %s48 = scalar_select %p45, %s46, %s47
      %p51 = pneg %p45
      %p52 = scmp.eq.s32.totalorder %s13, 1
      %p53 = por %p51, %p52
      %p54 = scmp.ne.s32.totalorder %s46, %s49
      %p55 = scmp.eq.s32.totalorder %s13, 0
      %p56 = por %p54, %p55
      %p57 = scmp.ne.s32.totalorder %s46, %s49
      %p58 = scmp.eq.s32.totalorder %s18, 1
      %p59 = por %p57, %p58
      %p60 = scmp.ne.s32.totalorder %s49, %s50
      %p61 = scmp.eq.s32.totalorder %s18, 0
      %p62 = por %p60, %p61
      %p63 = scmp.ne.s32.totalorder %s49, %s50
      %p64 = scmp.eq.s32.totalorder %s19, 1
      %p65 = por %p63, %p64
      %p67 = scmp.ne.s32.totalorder %s50, %s66
      %p68 = scmp.eq.s32.totalorder %s19, 0
      %p69 = por %p67, %p68
      %s70 = ssub.s32 %s20, %s39
      %s71 = ssub.s32 %s21, %s35
      %s72 = sor.u32 %s70, %s71
      %p73 = scmp.eq.s32.totalorder %s72, 0
      %s75 = sadd.s32 %s74, 1
      %s76 = scalar_select %p73, %s74, %s75
      %p79 = pneg %p73
      %p80 = scmp.eq.s32.totalorder %s13, 1
      %p81 = por %p79, %p80
      %p82 = scmp.ne.s32.totalorder %s74, %s77
      %p83 = scmp.eq.s32.totalorder %s13, 0
      %p84 = por %p82, %p83
      %p85 = scmp.ne.s32.totalorder %s74, %s77
      %p86 = scmp.eq.s32.totalorder %s18, 1
      %p87 = por %p85, %p86
      %p88 = scmp.ne.s32.totalorder %s77, %s78
      %p89 = scmp.eq.s32.totalorder %s18, 0
      %p90 = por %p88, %p89
      %p91 = scmp.ne.s32.totalorder %s77, %s78
      %p92 = scmp.eq.s32.totalorder %s19, 1
      %p93 = por %p91, %p92
      %p95 = scmp.ne.s32.totalorder %s78, %s94
      %p96 = scmp.eq.s32.totalorder %s19, 0
      %p97 = por %p95, %p96
      %p98 = scmp.le.s32.totalorder 1, %s13
      %p99 = scmp.lt.s32.totalorder %s13, 3
      %p100 = pnand %p98, %p99
      %p101 = pneg %p100
      // Predicated region
      $region9: #{tpu_custom_call.1} parent=5 // pred_check
        _
      $region10: #{tpu_custom_call.1} parent=5 // pred_check_branch
        %103 = sbr.rel (%p100) target = $region12
      $region11: #{tpu_custom_call.1} parent=5 // pred_region
        %s104 = ssub.s32 %s13, 1
      $region12: #{tpu_custom_call.1} parent=5 // pred_fallthru
        _
      %p105 = scmp.lt.s32.totalorder %s13, 2
      // Predicated region
      $region13: #{tpu_custom_call.1} parent=5 // pred_check
        %p106 = pneg %p105
      $region14: #{tpu_custom_call.1} parent=5 // pred_check_branch
        %108 = sbr.rel (%p106) target = $region16
      $region15: #{tpu_custom_call.1} parent=5 // pred_region
        // Predicated region
        $region17: #{tpu_custom_call.1} parent=15 // pred_check
          %p109 = pneg %p56
        $region18: #{tpu_custom_call.1} parent=15 // pred_check_branch
          %111 = sbr.rel (%p109) target = $region20
        $region19: #{tpu_custom_call.1} parent=15 // pred_region
          %s112 = sand.u32 %s46, 1
          %s113 = scalar_lea.sflag [#allocation3], %s112
          %s114 = sand.u32 %s46, 1
          %s115 = smul.addr %s114, 8
          %s116 = scalar_lea.vmem [#allocation2], %s115
          %s117 = sadd.s32 %s20, %s22
          %s118 = smul.u32 2, %s117
          %s120 = ssub.s32 128, 128
          %121 = vsyncadd %s113, %s120
          %s122 = smul.addr %s21, 2
          %s123 = sadd.s32 %s118, %s122
          %s124 = smul.addr %s123, 64
          %s125 = scalar_lea.hbm %s0, %s124
          %s127 = sshll.u32 %s116, 4
          %s128 = int_to_ptr.vmem [resolvable:$true] %s127
          %130 = dma.hbm_to_vmem [thread:$0]  %s125, 128, %s128, %s113
        $region20: #{tpu_custom_call.1} parent=15 // pred_fallthru
          _
      $region16: #{tpu_custom_call.1} parent=5 // pred_fallthru
        _
      %p131 = scmp.le.s32.totalorder 1, %s13
      %p132 = scmp.lt.s32.totalorder %s13, 3
      %p133 = pnand %p131, %p132
      %p134 = pneg %p133
      // Predicated region
      $region21: #{tpu_custom_call.1} parent=5 // pred_check
        _
      $region22: #{tpu_custom_call.1} parent=5 // pred_check_branch
        %136 = sbr.rel (%p133) target = $region24
      $region23: #{tpu_custom_call.1} parent=5 // pred_region
        %s137 = ssub.s32 %s13, 1
        %s138 = sand.u32 %s49, 1
        %s139 = scalar_lea.sflag [#allocation3], %s138
        %s140 = sand.u32 %s49, 1
        %s141 = smul.addr %s140, 8
        %s142 = scalar_lea.vmem [#allocation2], %s141
        // Predicated region
        $region25: #{tpu_custom_call.1} parent=23 // pred_check
          %p143 = pneg %p62
        $region26: #{tpu_custom_call.1} parent=23 // pred_check_branch
          %145 = sbr.rel (%p143) target = $region28
        $region27: #{tpu_custom_call.1} parent=23 // pred_region
          %146 = dma.done %s139, 128
        $region28: #{tpu_custom_call.1} parent=23 // pred_fallthru
          _
        %s147 = sand.u32 %s49, 1
        %s148 = scalar_lea.sflag [#allocation3], %s147
        %s149 = sand.u32 %s49, 1
        %s150 = smul.addr %s149, 8
        %s151 = scalar_lea.vmem [#allocation2], %s150
        %p152 = pneg %p62
        %p153 = pneg %p59
        %p154 = pneg %p90
        %p155 = pneg %p87
        %s156 = sand.u32 %s77, 1
        %s157 = scalar_lea.sflag [#allocation4], %s156
        %s158 = sand.u32 %s77, 1
        %s159 = smul.addr %s158, 4
        %s160 = scalar_lea.vmem [#allocation5], %s159
        %s161 = sadd.s32 %s23, %s25
        %s162 = smul.u32 2, %s161
        %p164 = scmp.eq.s32.totalorder %s25, 0
        // Predicated region
        $region29: #{tpu_custom_call.1} parent=23 // pred_check
          %p165 = pneg %p164
        $region30: #{tpu_custom_call.1} parent=23 // pred_check_branch
          %167 = sbr.rel (%p165) target = $region32
        $region31: #{tpu_custom_call.1} parent=23 // pred_region
          %vm168 = vcmask 27648
          %169 = vst.msk [vmem:[%s160] sm:$0xf] %vm168, 0.0
        $region32: #{tpu_custom_call.1} parent=23 // pred_fallthru
          _
        %v170 = vld [vmem:[%s142] sm:$0xff]
        %v172 = vcombine.high %v170, %v170
        %v174 = vpack.c.bf16 %v170, %v170
        %v175 = vpack.c.bf16 %v172, %v172
        %176 = vmatprep.subr.bf16.mxu0 %v175
        %177 = vmatpush1.bf16.xpose.msra.mxu0 %v174
        %178 = vmatprep.subr.bf16.mxu0 0
        %179 = vmatpush1.bf16.xpose.msra.mxu0 0
        %180 = vmatprep.subr.bf16.mxu0 0
        %181 = vmatpush1.bf16.xpose.msra.mxu0 0
        %182 = vmatprep.subr.bf16.mxu0 0
        %183 = vmatpush1.bf16.xpose.msra.mxu0 0
        %184 = vmatprep.subr.bf16.mxu0 0
        %185 = vmatpush1.bf16.xpose.msra.mxu0 0
        %186 = vmatprep.subr.bf16.mxu0 0
        %187 = vmatpush1.bf16.xpose.msra.mxu0 0
        %188 = vmatprep.subr.bf16.mxu0 0
        %189 = vmatpush1.bf16.xpose.msra.mxu0 0
        %190 = vmatprep.subr.bf16.mxu0 0
        %191 = vmatpush1.bf16.xpose.msra.mxu0 0
        %192 = vmatprep.subr.bf16.mxu0 0
        %193 = vmatpush1.bf16.xpose.msra.mxu0 0
        %194 = vmatprep.subr.bf16.mxu0 0
        %195 = vmatpush1.bf16.xpose.msra.mxu0 0
        %196 = vmatprep.subr.bf16.mxu0 0
        %197 = vmatpush1.bf16.xpose.msra.mxu0 0
        %198 = vmatprep.subr.bf16.mxu0 0
        %199 = vmatpush1.bf16.xpose.msra.mxu0 0
        %200 = vmatprep.subr.bf16.mxu0 0
        %201 = vmatpush1.bf16.xpose.msra.mxu0 0
        %202 = vmatprep.subr.bf16.mxu0 0
        %203 = vmatpush1.bf16.xpose.msra.mxu0 0
        %204 = vmatprep.subr.bf16.mxu0 0
        %205 = vmatpush1.bf16.xpose.msra.mxu0 0
        %206 = vmatprep.subr.bf16.mxu0 0
        %207 = vmatpush1.bf16.xpose.msra.mxu0 0
        %208 = vmatprep.mubr.bf16.mxu0 %v175
        %209 = vmatmul.mubr.bf16.gmra.mrb[0].mxu0 %v174
        %v210 = vpop.f32.mrb[0].mxu0
        %v211 = vadd.f32 0.0, %v210
        %v212 = vpop.f32.mrb[0].mxu0
        %v213 = vpop.f32.mrb[0].mxu0
        %v214 = vpop.f32.mrb[0].mxu0
        %215 = vdwg.mxu0
        %v216 = vld [vmem:[%s160] sm:$0xf]
        %v217 = vadd.f32 %v216, %v211
        %vm218 = vcmask 27648
        %219 = vst.msk [vmem:[%s160] sm:$0xf] %vm218, %v217
        %s220 = sand.u32 %s77, 1
        %s221 = scalar_lea.sflag [#allocation4], %s220
        %s222 = sand.u32 %s77, 1
        %s223 = smul.addr %s222, 4
        %s224 = scalar_lea.vmem [#allocation5], %s223
        // Predicated region
        $region33: #{tpu_custom_call.1} parent=23 // pred_check
          %p225 = pneg %p87
        $region34: #{tpu_custom_call.1} parent=23 // pred_check_branch
          %227 = sbr.rel (%p225) target = $region36
        $region35: #{tpu_custom_call.1} parent=23 // pred_region
          %s229 = ssub.s32 64, 64
          %230 = vsyncadd %s221, %s229
          %s231 = smul.addr %s23, 2
          %s232 = sadd.s32 %s24, %s231
          %s233 = smul.addr %s232, 64
          %s234 = scalar_lea.hbm %s1, %s233
          %s236 = sshll.u32 %s224, 4
          %s237 = int_to_ptr.vmem [resolvable:$true] %s236
          %239 = dma.vmem_to_hbm [thread:$0]  %s237, 64, %s234, %s221
        $region36: #{tpu_custom_call.1} parent=23 // pred_fallthru
          _
      $region24: #{tpu_custom_call.1} parent=5 // pred_fallthru
        _
      %p240 = scmp.le.s32.totalorder 2, %s13
      // Predicated region
      $region37: #{tpu_custom_call.1} parent=5 // pred_check
        %p241 = pneg %p240
      $region38: #{tpu_custom_call.1} parent=5 // pred_check_branch
        %243 = sbr.rel (%p241) target = $region40
      $region39: #{tpu_custom_call.1} parent=5 // pred_region
        %s244 = ssub.s32 %s13, 2
        // Predicated region
        $region41: #{tpu_custom_call.1} parent=39 // pred_check
          %p245 = pneg %p93
        $region42: #{tpu_custom_call.1} parent=39 // pred_check_branch
          %247 = sbr.rel (%p245) target = $region44
        $region43: #{tpu_custom_call.1} parent=39 // pred_region
          %s248 = sand.u32 %s78, 1
          %s249 = scalar_lea.sflag [#allocation4], %s248
          %s250 = sand.u32 %s78, 1
          %s251 = smul.addr %s250, 4
          %s252 = scalar_lea.vmem [#allocation5], %s251
          %253 = dma.done %s249, 64
        $region44: #{tpu_custom_call.1} parent=39 // pred_fallthru
          _
      $region40: #{tpu_custom_call.1} parent=5 // pred_fallthru
        _
    $region6: #{tpu_custom_call.1} parent=1 // loop_footer
      %s17 = sadd.s32 1, %s13
    $region7: #{tpu_custom_call.1} parent=1 // loop_footer_branch
      %12 = sbr.rel target = $region3
    $region8: #{tpu_custom_call.1} parent=1 // loop_exit
      _
    %254 = vsyncpa [#allocation3], 1
    %s255 = scalar_lea.sflag [#allocation3], 1
    %256 = vsyncpa %s255, 1
    %257 = vsyncpa [#allocation4], 1
    %s258 = scalar_lea.sflag [#allocation4], 1
    %259 = vsyncpa %s258, 1

</llo_original>
